<compile_context>
chip_gen: v7x
topology: tpu7x:2x2x1
jax: 0.10.0
libtpu: 0.0.40
codegen_flags: <defaults>
</compile_context>

<pallas_src>
import jax
import jax.numpy as jnp
from jax.experimental import pallas as pl
from jax.experimental.pallas import tpu as pltpu

ALPHA = 0.3
BETA = 0.7
SMOOTH = 1.0
SQUARE = False  # module default; the algebraic simplification requires it.
_COEF = 1.0 - ALPHA - BETA  # ~0 for (0.3, 0.7); kept for generality.


def _round_up(n, m):
    return ((n + m - 1) // m) * m


def _tversky_kernel(x_ref, y_ref, o_ref, tp_acc, d_acc):
    """Grid = (row_blocks [parallel], hw_tiles [arbitrary]).

    x_ref, y_ref : (ROW_BLOCK, TILE_HW) tiles, native dtype.
    o_ref        : (ROW_BLOCK, 1) per-row Tversky ratio (written on last tile).
    tp_acc,d_acc : (ROW_BLOCK, 1) f32 running sums, live across hw tiles.
    """
    j = pl.program_id(1)

    @pl.when(j == 0)
    def _init():
        tp_acc[...] = jnp.zeros_like(tp_acc)
        d_acc[...] = jnp.zeros_like(d_acc)

    x = x_ref[...].astype(jnp.float32)
    y = y_ref[...].astype(jnp.float32)

    # Two reductions only (SQUARE=False):
    #   tp = sum(x*y)
    #   d  = alpha*sum(x) + beta*sum(y)  accumulated as sum(alpha*x + beta*y)
    tp_acc[...] += jnp.sum(x * y, axis=-1, keepdims=True)
    d_acc[...] += jnp.sum(ALPHA * x + BETA * y, axis=-1, keepdims=True)

    @pl.when(j == pl.num_programs(1) - 1)
    def _finalize():
        tp = tp_acc[...]
        num = tp + SMOOTH
        # den = tp + alpha*(sum_x - tp) + beta*(sum_y - tp) + smooth
        #     = (1 - alpha - beta)*tp + d + smooth
        den = _COEF * tp + d_acc[...] + SMOOTH
        o_ref[...] = num / den


def tversky_loss(x, y_onehot, *, tile_hw_max=8192, row_block_max=64):
    """x: (B,C,H,W) probabilities; y_onehot: (B,C,H,W) one-hot (any dtype).

    Returns scalar f32 loss = -mean_{b,c} Tversky(b,c).
    """
    assert not SQUARE, "algebraic tp/fp/fn simplification only valid for square=False"
    B, C, H, W = x.shape
    BC = B * C
    HW = H * W

    row_block = min(_round_up(BC, 8), row_block_max)
    tile_hw = min(_round_up(HW, 128), tile_hw_max)

    bc_pad = _round_up(BC, row_block)
    hw_pad = _round_up(HW, tile_hw)

    # Stream native dtypes; NO pre-cast to f32 (kernel upcasts per tile).
    x2 = x.reshape(BC, HW)
    y2 = y_onehot.reshape(BC, HW)
    if bc_pad != BC or hw_pad != HW:
        # Zero padding contributes nothing to tp / d; padded rows are dropped
        # before the mean below.
        x2 = jnp.pad(x2, ((0, bc_pad - BC), (0, hw_pad - HW)))
        y2 = jnp.pad(y2, ((0, bc_pad - BC), (0, hw_pad - HW)))

    grid = (bc_pad // row_block, hw_pad // tile_hw)

    # VMEM budget: 2 inputs x 2 pipeline buffers x block, plus slack.
    in_block_bytes = row_block * tile_hw * (x2.dtype.itemsize + y2.dtype.itemsize)
    vmem_limit = int(min(max(4 * in_block_bytes + (2 << 20), 8 << 20), 32 << 20))

    cost = pl.CostEstimate(
        flops=6 * BC * HW,
        transcendentals=0,
        bytes_accessed=(x2.size * x2.dtype.itemsize
                        + y2.size * y2.dtype.itemsize
                        + bc_pad * 4),
    )

    per_row = pl.pallas_call(
        _tversky_kernel,
        out_shape=jax.ShapeDtypeStruct((bc_pad, 1), jnp.float32),
        grid_spec=pltpu.PrefetchScalarGridSpec(
            num_scalar_prefetch=0,
            grid=grid,
            in_specs=[
                pl.BlockSpec((row_block, tile_hw), lambda i, j: (i, j)),
                pl.BlockSpec((row_block, tile_hw), lambda i, j: (i, j)),
            ],
            out_specs=pl.BlockSpec((row_block, 1), lambda i, j: (i, 0)),
            scratch_shapes=[pltpu.VMEM((row_block, 1), jnp.float32)] * 2,
        ),
        compiler_params=pltpu.CompilerParams(
            dimension_semantics=("parallel", "arbitrary"),
            vmem_limit_bytes=vmem_limit,
        ),
        cost_estimate=cost,
    )(x2, y2)

    # do_bg=True, batch_dice=False -> mean over all (b, c) entries; negate.
    # TODO(synk): non-default branches (loss_mask, apply_nonlin, batch_dice,
    # do_bg=False, square=True) are not implemented here.
    return -jnp.mean(per_row[:BC, 0])


def _reference(x, y_onehot):
    # pure-JAX reference of the PyTorch forward (same defaults)
    axes = (2, 3)
    tp = jnp.sum(x * y_onehot, axis=axes)
    fp = jnp.sum(x * (1.0 - y_onehot), axis=axes)
    fn = jnp.sum((1.0 - x) * y_onehot, axis=axes)
    tversky = (tp + SMOOTH) / (tp + ALPHA * fp + BETA * fn + SMOOTH)
    return -jnp.mean(tversky)


if __name__ == "__main__":
    B, C, H, W = 2, 4, 16, 16
    key = jax.random.PRNGKey(0)
    kx, ky = jax.random.split(key)

    # predictions (module default apply_nonlin=None, so feed probabilities)
    logits = jax.random.normal(kx, (B, C, H, W), dtype=jnp.float32)
    x = jax.nn.softmax(logits, axis=1)

    # one-hot ground truth streamed as bf16 (0/1 exact in bf16; halves HBM
    # traffic for this operand). Kernel upcasts to f32 before accumulating.
    labels = jax.random.randint(ky, (B, H, W), 0, C)
    y_onehot = jax.nn.one_hot(labels, C, axis=1, dtype=jnp.bfloat16)

    loss = tversky_loss(x, y_onehot)
    jax.block_until_ready(loss)

    ref = _reference(x, y_onehot.astype(jnp.float32))
    assert jnp.allclose(loss, ref, atol=1e-5, rtol=1e-5), (loss, ref)

    print("KERNEL_OK")
</pallas_src>

<mosaic_0001>
module attributes {stable_mosaic.version = 11 : i64} {
  func.func @_tversky_kernel(%arg0: i32, %arg1: i32, %arg2: memref<8x256xf32, #tpu.memory_space<vmem>>, %arg3: memref<8x256xbf16, #tpu.memory_space<vmem>>, %arg4: memref<8x1xf32, #tpu.memory_space<vmem>>, %arg5: memref<8x1xf32, #tpu.memory_space<vmem>>, %arg6: memref<8x1xf32, #tpu.memory_space<vmem>>) attributes {dimension_semantics = [#tpu.dimension_semantics<parallel>, #tpu.dimension_semantics<arbitrary>], iteration_bounds = array<i64: 1, 1>, scalar_prefetch = 0 : i64, scratch_operands = 2 : i64, tpu.core_type = #tpu.core_type<tc>, window_params = [{transform_indices = @transform_0, window_bounds = array<i64: 8, 256>}, {transform_indices = @transform_1, window_bounds = array<i64: 8, 256>}, {transform_indices = @transform_2, window_bounds = array<i64: 8, 1>}]} {
    %c0_i32 = arith.constant 0 : i32
    %0 = arith.cmpi eq, %arg1, %c0_i32 : i32
    %1 = arith.extui %0 : i1 to i32
    %c0_i32_0 = arith.constant 0 : i32
    %2 = arith.cmpi ne, %1, %c0_i32_0 : i32
    scf.if %2 {
      %cst_17 = arith.constant 0.000000e+00 : f32
      %25 = vector.broadcast %cst_17 : f32 to vector<8x1xf32>
      %c0_18 = arith.constant 0 : index
      %c0_19 = arith.constant 0 : index
      %26 = vector.load %arg5[%c0_18, %c0_19] : memref<8x1xf32, #tpu.memory_space<vmem>>, vector<8x1xf32>
      tpu.vector_store %arg5[%c0_18, %c0_19], %25 {strides = array<i32>} : memref<8x1xf32, #tpu.memory_space<vmem>>, vector<8x1xf32>,
      %cst_20 = arith.constant 0.000000e+00 : f32
      %27 = vector.broadcast %cst_20 : f32 to vector<8x1xf32>
      %c0_21 = arith.constant 0 : index
      %c0_22 = arith.constant 0 : index
      %28 = vector.load %arg6[%c0_21, %c0_22] : memref<8x1xf32, #tpu.memory_space<vmem>>, vector<8x1xf32>
      tpu.vector_store %arg6[%c0_21, %c0_22], %27 {strides = array<i32>} : memref<8x1xf32, #tpu.memory_space<vmem>>, vector<8x1xf32>,
    } else {
    }
    %c0 = arith.constant 0 : index
    %c0_1 = arith.constant 0 : index
    %3 = vector.load %arg2[%c0, %c0_1] : memref<8x256xf32, #tpu.memory_space<vmem>>, vector<8x256xf32>
    %c0_2 = arith.constant 0 : index
    %c0_3 = arith.constant 0 : index
    %4 = vector.load %arg3[%c0_2, %c0_3] : memref<8x256xbf16, #tpu.memory_space<vmem>>, vector<8x256xbf16>
    %5 = arith.extf %4 : vector<8x256xbf16> to vector<8x256xf32>
    %c0_4 = arith.constant 0 : index
    %c0_5 = arith.constant 0 : index
    %6 = vector.load %arg5[%c0_4, %c0_5] : memref<8x1xf32, #tpu.memory_space<vmem>>, vector<8x1xf32>
    %7 = arith.mulf %3, %5 : vector<8x256xf32>
    %cst = arith.constant dense<0.000000e+00> : vector<8xf32>
    %8 = vector.multi_reduction <add>, %7, %cst [1] : vector<8x256xf32> to vector<8xf32>
    %9 = vector.shape_cast %8 : vector<8xf32> to vector<8x1xf32>
    %10 = arith.addf %6, %9 : vector<8x1xf32>
    %c0_6 = arith.constant 0 : index
    %c0_7 = arith.constant 0 : index
    %11 = vector.load %arg5[%c0_6, %c0_7] : memref<8x1xf32, #tpu.memory_space<vmem>>, vector<8x1xf32>
    tpu.vector_store %arg5[%c0_6, %c0_7], %10 {strides = array<i32>} : memref<8x1xf32, #tpu.memory_space<vmem>>, vector<8x1xf32>,
    %c0_8 = arith.constant 0 : index
    %c0_9 = arith.constant 0 : index
    %12 = vector.load %arg6[%c0_8, %c0_9] : memref<8x1xf32, #tpu.memory_space<vmem>>, vector<8x1xf32>
    %cst_10 = arith.constant 3.000000e-01 : f32
    %13 = vector.broadcast %cst_10 : f32 to vector<8x256xf32>
    %14 = arith.mulf %13, %3 : vector<8x256xf32>
    %cst_11 = arith.constant 0.699999988 : f32
    %15 = vector.broadcast %cst_11 : f32 to vector<8x256xf32>
    %16 = arith.mulf %15, %5 : vector<8x256xf32>
    %17 = arith.addf %14, %16 : vector<8x256xf32>
    %cst_12 = arith.constant dense<0.000000e+00> : vector<8xf32>
    %18 = vector.multi_reduction <add>, %17, %cst_12 [1] : vector<8x256xf32> to vector<8xf32>
    %19 = vector.shape_cast %18 : vector<8xf32> to vector<8x1xf32>
    %20 = arith.addf %12, %19 : vector<8x1xf32>
    %c0_13 = arith.constant 0 : index
    %c0_14 = arith.constant 0 : index
    %21 = vector.load %arg6[%c0_13, %c0_14] : memref<8x1xf32, #tpu.memory_space<vmem>>, vector<8x1xf32>
    tpu.vector_store %arg6[%c0_13, %c0_14], %20 {strides = array<i32>} : memref<8x1xf32, #tpu.memory_space<vmem>>, vector<8x1xf32>,
    %c0_i32_15 = arith.constant 0 : i32
    %22 = arith.cmpi eq, %arg1, %c0_i32_15 : i32
    %23 = arith.extui %22 : i1 to i32
    %c0_i32_16 = arith.constant 0 : i32
    %24 = arith.cmpi ne, %23, %c0_i32_16 : i32
    scf.if %24 {
      %c0_17 = arith.constant 0 : index
      %c0_18 = arith.constant 0 : index
      %25 = vector.load %arg5[%c0_17, %c0_18] : memref<8x1xf32, #tpu.memory_space<vmem>>, vector<8x1xf32>
      %cst_19 = arith.constant 1.000000e+00 : f32
      %26 = vector.broadcast %cst_19 : f32 to vector<8x1xf32>
      %27 = arith.addf %25, %26 : vector<8x1xf32>
      %cst_20 = arith.constant 0.000000e+00 : f32
      %28 = vector.broadcast %cst_20 : f32 to vector<8x1xf32>
      %29 = arith.mulf %28, %25 : vector<8x1xf32>
      %c0_21 = arith.constant 0 : index
      %c0_22 = arith.constant 0 : index
      %30 = vector.load %arg6[%c0_21, %c0_22] : memref<8x1xf32, #tpu.memory_space<vmem>>, vector<8x1xf32>
      %31 = arith.addf %29, %30 : vector<8x1xf32>
      %cst_23 = arith.constant 1.000000e+00 : f32
      %32 = vector.broadcast %cst_23 : f32 to vector<8x1xf32>
      %33 = arith.addf %31, %32 : vector<8x1xf32>
      %34 = arith.divf %27, %33 : vector<8x1xf32>
      %c0_24 = arith.constant 0 : index
      %c0_25 = arith.constant 0 : index
      %35 = vector.load %arg4[%c0_24, %c0_25] : memref<8x1xf32, #tpu.memory_space<vmem>>, vector<8x1xf32>
      tpu.vector_store %arg4[%c0_24, %c0_25], %34 {strides = array<i32>} : memref<8x1xf32, #tpu.memory_space<vmem>>, vector<8x1xf32>,
    } else {
    }
    return
  }
  func.func @transform_0(%arg0: i32, %arg1: i32) -> (i32, i32) {
    %c0_i32 = arith.constant 0 : i32
    return %arg0, %arg1 : i32, i32
  }
  func.func @transform_1(%arg0: i32, %arg1: i32) -> (i32, i32) {
    %c0_i32 = arith.constant 0 : i32
    return %arg0, %arg1 : i32, i32
  }
  func.func @transform_2(%arg0: i32, %arg1: i32) -> (i32, i32) {
    %c0_i32 = arith.constant 0 : i32
    %c0_i32_0 = arith.constant 0 : i32
    return %arg0, %c0_i32 : i32, i32
  }
}

</mosaic_0001>

<llo_original>
// kernel: tpu_custom_call.1
$region0: #{tpu_custom_call.1}
  #allocation0 [shape = 'u32[]', space=smem, size = 0x4, offset = 0x4, fixed_abs, tag = 'smem constant byte address 0x4 - core index']
  #allocation1 [shape = 'u32[144,128]{1,0:T(1,128)}', space=vmem, size = 0x12000, scoped, tag = 'internal scratch']
  #allocation2 [shape = 'f32[8,1]{1,0:T(8,128)}', space=vmem, size = 0x1000, scoped, tag = 'scratch operand']
  #allocation3 [shape = 'f32[8,1]{1,0:T(8,128)}', space=vmem, size = 0x1000, scoped, tag = 'scratch operand']
  %s0 = inlined_call_operand.hbm [shape: f32[8,256], index: 0, kind: input, shape index: {}]
  %s1 = inlined_call_operand.hbm [shape: bf16[8,256], index: 1, kind: input, shape index: {}]
  %s2 = inlined_call_operand.vmem [shape: f32[8,1], index: 2, kind: output, shape index: {}]
  %s3 = sld [smem:[#allocation0]]
  $region34: #{tpu_custom_call.1} parent=0
    _
  %s5 = ssub.s32 1, %s3
  %s6 = scalar_select 0, %s5, %s3
  $region1: #{tpu_custom_call.1} parent=0
    #allocation4 [shape = 'u8[8192]{0}', space=vmem, size = 0x2000, scoped, tag = 'input window, operand 0, single buffered']
    #allocation5 [shape = 's32[1]{0}', space=sflag, size = 0x4, scoped, tag = 'scoped memory for tpu_custom_call.1']
    #allocation6 [shape = 'u8[4096]{0}', space=vmem, size = 0x1000, scoped, tag = 'input window, operand 1, single buffered']
    #allocation7 [shape = 's32[1]{0}', space=sflag, size = 0x4, scoped, tag = 'scoped memory for tpu_custom_call.1']
    %7 = vsyncpa [#allocation5], 0
    %8 = vsyncpa [#allocation7], 0
    // Predicated region
    $region2: #{tpu_custom_call.1} parent=1 // pred_check
      _
    $region3: #{tpu_custom_call.1} parent=1 // pred_check_branch
      %10 = sbr.rel (0) target = $region5
    $region4: #{tpu_custom_call.1} parent=1 // pred_region
      %s12 = ssub.s32 256, 256
      %13 = vsyncadd [#allocation5], %s12
      %s15 = sshll.u32 [#allocation4], 4
      %s16 = int_to_ptr.vmem [resolvable:$true] %s15
      %18 = dma.hbm_to_vmem [thread:$0]  %s0, 256, %s16, [#allocation5]
    $region5: #{tpu_custom_call.1} parent=1 // pred_fallthru
      _
    // Predicated region
    $region6: #{tpu_custom_call.1} parent=1 // pred_check
      _
    $region7: #{tpu_custom_call.1} parent=1 // pred_check_branch
      %20 = sbr.rel (0) target = $region9
    $region8: #{tpu_custom_call.1} parent=1 // pred_region
      %s22 = ssub.s32 128, 128
      %23 = vsyncadd [#allocation7], %s22
      %s25 = sshll.u32 [#allocation6], 4
      %s26 = int_to_ptr.vmem [resolvable:$true] %s25
      %28 = dma.hbm_to_vmem [thread:$0]  %s1, 128, %s26, [#allocation7]
    $region9: #{tpu_custom_call.1} parent=1 // pred_fallthru
      _
    // Predicated region
    $region10: #{tpu_custom_call.1} parent=1 // pred_check
      _
    $region11: #{tpu_custom_call.1} parent=1 // pred_check_branch
      %30 = sbr.rel (0) target = $region13
    $region12: #{tpu_custom_call.1} parent=1 // pred_region
      %31 = dma.done [#allocation5], 256
    $region13: #{tpu_custom_call.1} parent=1 // pred_fallthru
      _
    // Predicated region
    $region14: #{tpu_custom_call.1} parent=1 // pred_check
      _
    $region15: #{tpu_custom_call.1} parent=1 // pred_check_branch
      %33 = sbr.rel (0) target = $region17
    $region16: #{tpu_custom_call.1} parent=1 // pred_region
      %34 = dma.done [#allocation7], 128
    $region17: #{tpu_custom_call.1} parent=1 // pred_fallthru
      _
    %p35 = scmp.eq.s32.totalorder 0, 0
    // Predicated region
    $region18: #{tpu_custom_call.1} parent=1 // pred_check
      %p36 = pneg %p35
    $region19: #{tpu_custom_call.1} parent=1 // pred_check_branch
      %38 = sbr.rel (%p36) target = $region21
    $region20: #{tpu_custom_call.1} parent=1 // pred_region
      %vm39 = vcmask 7168
      %40 = vst.msk [vmem:[#allocation2] sm:$0xff] %vm39, 0.0
      %41 = vst.msk [vmem:[#allocation3] sm:$0xff] %vm39, 0.0
    $region21: #{tpu_custom_call.1} parent=1 // pred_fallthru
      _
    %v42 = vld [vmem:[#allocation4] sm:$0xff]
    %v43 = vld [vmem:[#allocation4 + $0x8] sm:$0xff]
    %v44 = vld [vmem:[#allocation6] sm:$0xff]
    %v45 = vunpack.c.l.bf16 %v44
    %v46 = vunpack.c.h.bf16 %v44
    %v47 = vld [vmem:[#allocation2] sm:$0xff]
    %v48 = vmul.f32 %v42, %v45
    %v49 = vmul.f32 %v43, %v46
    %v50 = vadd.f32 %v48, %v49
    %51 = vadd.xlane.f32.xlu0 %v50
    %v52 = vpop.xlane.xlu0 %51
    %v53 = vadd.f32 %v47, %v52
    %vm54 = vcmask 7168
    %55 = vst.msk [vmem:[#allocation2] sm:$0xff] %vm54, %v53
    %v56 = vld [vmem:[#allocation3] sm:$0xff]
    %v57 = vmul.f32 %v42, 0.3
    %v58 = vmul.f32 %v43, 0.3
    %v59 = vmul.f32 %v45, 0.7
    %v60 = vmul.f32 %v46, 0.7
    %v61 = vadd.f32 %v57, %v59
    %v62 = vadd.f32 %v58, %v60
    %v63 = vadd.f32 %v61, %v62
    %64 = vadd.xlane.f32.xlu0 %v63
    %v65 = vpop.xlane.xlu0 %64
    %v66 = vadd.f32 %v56, %v65
    %67 = vst.msk [vmem:[#allocation3] sm:$0xff] %vm54, %v66
    // Predicated region
    $region22: #{tpu_custom_call.1} parent=1 // pred_check
      %p68 = pneg %p35
    $region23: #{tpu_custom_call.1} parent=1 // pred_check_branch
      %70 = sbr.rel (%p68) target = $region25
    $region24: #{tpu_custom_call.1} parent=1 // pred_region
      %v71 = vld [vmem:[#allocation2] sm:$0xff]
      %v72 = vadd.f32 %v71, 1.0
      %v73 = vmul.f32 %v71, 0.0
      %v74 = vld [vmem:[#allocation3] sm:$0xff]
      %v75 = vadd.f32 %v73, %v74
      %v76 = vadd.f32 %v75, 1.0
      %v77 = vrcp.pop %v76
      %v78 = vmul.f32 %v72, %v77
      %79 = vst.msk [vmem:[%s2] sm:$0xff] %vm54, %v78
    $region25: #{tpu_custom_call.1} parent=1 // pred_fallthru
      _
    // Predicated region
    $region26: #{tpu_custom_call.1} parent=1 // pred_check
      _
    $region27: #{tpu_custom_call.1} parent=1 // pred_check_branch
      %81 = sbr.rel (0) target = $region29
    $region28: #{tpu_custom_call.1} parent=1 // pred_region
      _
    $region29: #{tpu_custom_call.1} parent=1 // pred_fallthru
      _
    // Predicated region
    $region30: #{tpu_custom_call.1} parent=1 // pred_check
      _
    $region31: #{tpu_custom_call.1} parent=1 // pred_check_branch
      %83 = sbr.rel (0) target = $region33
    $region32: #{tpu_custom_call.1} parent=1 // pred_region
      _
    $region33: #{tpu_custom_call.1} parent=1 // pred_fallthru
      _
    %84 = vsyncpa [#allocation5], 1
    %85 = vsyncpa [#allocation7], 1

</llo_original>
